<compile_context>
chip_gen: v7x
topology: tpu7x:2x2x1
jax: 0.10.0
libtpu: 0.0.40
codegen_flags: <defaults>
</compile_context>

<pallas_src>
import numpy as np
import jax
import jax.numpy as jnp
from jax.experimental import pallas as pl
from jax.experimental.pallas import tpu as pltpu


def cross_network_kernel(x_ref, wt_ref, bwcum_ref, bsum_ref, o_ref):
    # x_ref:     (TB, D) input tile (x0 for this tile)
    # wt_ref:    (D, L)  stacked layer weights, transposed (W^T)
    # bwcum_ref: (1, L)  bwcum[i] = sum_{j<i} b_j . w_i
    # bsum_ref:  (1, D)  sum_i b_i
    # o_ref:     (TB, D) output tile
    x0 = x_ref[...]                                    # (TB, D) f32
    L = wt_ref.shape[1]

    # S0 = x0 @ W^T on the MXU: (TB, D) x (D, L) -> (TB, L)
    s0 = jnp.dot(x0, wt_ref[...], preferred_element_type=jnp.float32)

    bwcum = bwcum_ref[...]                             # (1, L)
    c = jnp.ones((x0.shape[0], 1), dtype=jnp.float32)  # c_0 = 1

    # Tiny O(TB*L) recurrence; L is small and static -> unrolled.
    for i in range(L):
        s_i = c * s0[:, i:i + 1] + bwcum[:, i:i + 1]   # (TB, 1)
        c = c + s_i                                     # c_{i+1}

    # x_L = x0 * (1 + sum_i s_i) + sum_i b_i
    o_ref[...] = (x0 * c + bsum_ref[...]).astype(o_ref.dtype)


def _round_up(v, m):
    return ((v + m - 1) // m) * m


def _default_block_b(D, target_bytes=2 * 1024 * 1024):
    # Target ~2 MiB per f32 input tile; keep it a multiple of 8 sublanes.
    tb = max(8, (target_bytes // (D * 4)) // 8 * 8)
    return int(min(tb, 8192))


def cross_network(x, W, b, *, block_b=None):
    """x: (B, D) f32; W: (L, D) f32 (layer weights); b: (L, D) f32 -> (B, D) f32."""
    B, D = x.shape
    L = W.shape[0]

    if block_b is None:
        block_b = _default_block_b(D)
    TB = min(block_b, B)
    # v7x: guarantee >=2 grid steps when the batch allows it, so
    # dimension_semantics=("parallel",) actually shards across both TensorCores.
    if TB == B and B >= 16:
        TB = max(8, _round_up(pl.cdiv(B, 2), 8))
    grid = (pl.cdiv(B, TB),)

    # Small per-layer constants, precomputed once outside the kernel.
    Wt = W.T                                           # (D, L)
    BW = b @ W.T                                       # (L, L), BW[j, i] = b_j . w_i
    mask = jnp.triu(jnp.ones((L, L), dtype=BW.dtype), k=1)   # 1 where j < i
    bw_cum = jnp.sum(mask * BW, axis=0).reshape(1, L)  # (1, L)
    b_sum = jnp.sum(b, axis=0).reshape(1, D)           # (1, D)

    return pl.pallas_call(
        cross_network_kernel,
        out_shape=jax.ShapeDtypeStruct((B, D), x.dtype),
        grid=grid,
        in_specs=[
            pl.BlockSpec((TB, D), lambda i: (i, 0)),   # batch-tiled input
            pl.BlockSpec((D, L), lambda i: (0, 0)),    # resident W^T
            pl.BlockSpec((1, L), lambda i: (0, 0)),    # resident bw_cum
            pl.BlockSpec((1, D), lambda i: (0, 0)),    # resident sum(b)
        ],
        out_specs=pl.BlockSpec((TB, D), lambda i: (i, 0)),
        compiler_params=pltpu.CompilerParams(
            dimension_semantics=("parallel",),
            vmem_limit_bytes=48 * 1024 * 1024,
        ),
    )(x, Wt, bw_cum, b_sum)


if __name__ == "__main__":
    # Small, deterministic setup consistent with the module.
    B = 32           # batch (>=16 -> exercises the 2-grid-step / megacore path)
    D = 128          # input_dim (lane-dense: multiple of 128)
    L = 3            # cn_layers

    key = jax.random.PRNGKey(0)
    k_x, k_w = jax.random.split(key, 2)

    x = jax.random.normal(k_x, (B, D), dtype=jnp.float32)
    # Stacked Linear(D, 1, bias=False) weights, scaled ~ PyTorch default init.
    W = jax.random.normal(k_w, (L, D), dtype=jnp.float32) / np.sqrt(D)
    # b parameters initialized to zeros (as in __init__); perturb slightly so the
    # bias path is actually exercised.
    b = jnp.full((L, D), 0.01, dtype=jnp.float32)

    out = cross_network(x, W, b)
    out = jax.block_until_ready(out)

    # Pure-JAX reference of the PyTorch forward (original layer recurrence).
    x0 = x
    xr = x
    for i in range(L):
        xw_ref = xr @ W[i][:, None]            # (B, 1)
        xr = x0 * xw_ref + b[i][None, :] + xr  # (B, D)
    np.testing.assert_allclose(np.asarray(out), np.asarray(xr),
                               rtol=1e-4, atol=1e-4)

    assert out.shape == (B, D)
    print("KERNEL_OK")
</pallas_src>

<mosaic_0001>
module attributes {stable_mosaic.version = 11 : i64} {
  func.func @cross_network_kernel(%arg0: i32, %arg1: memref<16x128xf32, #tpu.memory_space<vmem>>, %arg2: memref<128x3xf32, #tpu.memory_space<vmem>>, %arg3: memref<1x3xf32, #tpu.memory_space<vmem>>, %arg4: memref<1x128xf32, #tpu.memory_space<vmem>>, %arg5: memref<16x128xf32, #tpu.memory_space<vmem>>) attributes {dimension_semantics = [#tpu.dimension_semantics<parallel>], iteration_bounds = array<i64: 2>, scalar_prefetch = 0 : i64, scratch_operands = 0 : i64, tpu.core_type = #tpu.core_type<tc>, window_params = [{transform_indices = @transform_0, window_bounds = array<i64: 16, 128>}, {pipeline_mode = #tpu.pipeline_mode<synchronous>, transform_indices = @transform_1, window_bounds = array<i64: 128, 3>}, {pipeline_mode = #tpu.pipeline_mode<synchronous>, transform_indices = @transform_2, window_bounds = array<i64: 1, 3>}, {pipeline_mode = #tpu.pipeline_mode<synchronous>, transform_indices = @transform_3, window_bounds = array<i64: 1, 128>}, {transform_indices = @transform_4, window_bounds = array<i64: 16, 128>}]} {
    %c0 = arith.constant 0 : index
    %c0_0 = arith.constant 0 : index
    %0 = vector.load %arg1[%c0, %c0_0] : memref<16x128xf32, #tpu.memory_space<vmem>>, vector<16x128xf32>
    %c0_1 = arith.constant 0 : index
    %c0_2 = arith.constant 0 : index
    %1 = vector.load %arg2[%c0_1, %c0_2] : memref<128x3xf32, #tpu.memory_space<vmem>>, vector<128x3xf32>
    %cst = arith.constant dense<0.000000e+00> : vector<16x3xf32>
    %2 = tpu.matmul %0, %1, %cst {dimension_numbers = #tpu.dot_dimension_numbers<[1], [0], [0], [1], [0, 0, 1, 1], [], []>} : vector<16x128xf32>, vector<128x3xf32>, vector<16x3xf32> -> vector<16x3xf32>
    %c0_3 = arith.constant 0 : index
    %c0_4 = arith.constant 0 : index
    %3 = vector.load %arg3[%c0_3, %c0_4] : memref<1x3xf32, #tpu.memory_space<vmem>>, vector<1x3xf32>
    %cst_5 = arith.constant 1.000000e+00 : f32
    %4 = vector.broadcast %cst_5 : f32 to vector<16x1xf32>
    %5 = vector.extract_strided_slice %2 {offsets = [0, 0], sizes = [16, 1], strides = [1, 1]} : vector<16x3xf32> to vector<16x1xf32>
    %6 = arith.mulf %4, %5 : vector<16x1xf32>
    %7 = vector.extract_strided_slice %3 {offsets = [0, 0], sizes = [1, 1], strides = [1, 1]} : vector<1x3xf32> to vector<1x1xf32>
    %8 = vector.broadcast %7 : vector<1x1xf32> to vector<16x1xf32>
    %9 = arith.addf %6, %8 : vector<16x1xf32>
    %10 = arith.addf %4, %9 : vector<16x1xf32>
    %11 = vector.extract_strided_slice %2 {offsets = [0, 1], sizes = [16, 1], strides = [1, 1]} : vector<16x3xf32> to vector<16x1xf32>
    %12 = arith.mulf %10, %11 : vector<16x1xf32>
    %13 = vector.extract_strided_slice %3 {offsets = [0, 1], sizes = [1, 1], strides = [1, 1]} : vector<1x3xf32> to vector<1x1xf32>
    %14 = vector.broadcast %13 : vector<1x1xf32> to vector<16x1xf32>
    %15 = arith.addf %12, %14 : vector<16x1xf32>
    %16 = arith.addf %10, %15 : vector<16x1xf32>
    %17 = vector.extract_strided_slice %2 {offsets = [0, 2], sizes = [16, 1], strides = [1, 1]} : vector<16x3xf32> to vector<16x1xf32>
    %18 = arith.mulf %16, %17 : vector<16x1xf32>
    %19 = vector.extract_strided_slice %3 {offsets = [0, 2], sizes = [1, 1], strides = [1, 1]} : vector<1x3xf32> to vector<1x1xf32>
    %20 = vector.broadcast %19 : vector<1x1xf32> to vector<16x1xf32>
    %21 = arith.addf %18, %20 : vector<16x1xf32>
    %22 = arith.addf %16, %21 : vector<16x1xf32>
    %23 = vector.broadcast %22 : vector<16x1xf32> to vector<16x128xf32>
    %24 = arith.mulf %0, %23 : vector<16x128xf32>
    %c0_6 = arith.constant 0 : index
    %c0_7 = arith.constant 0 : index
    %25 = vector.load %arg4[%c0_6, %c0_7] : memref<1x128xf32, #tpu.memory_space<vmem>>, vector<1x128xf32>
    %26 = vector.broadcast %25 : vector<1x128xf32> to vector<16x128xf32>
    %27 = arith.addf %24, %26 : vector<16x128xf32>
    %c0_8 = arith.constant 0 : index
    %c0_9 = arith.constant 0 : index
    %28 = vector.load %arg5[%c0_8, %c0_9] : memref<16x128xf32, #tpu.memory_space<vmem>>, vector<16x128xf32>
    tpu.vector_store %arg5[%c0_8, %c0_9], %27 {strides = array<i32>} : memref<16x128xf32, #tpu.memory_space<vmem>>, vector<16x128xf32>,
    return
  }
  func.func @transform_0(%arg0: i32) -> (i32, i32) {
    %c0_i32 = arith.constant 0 : i32
    %c0_i32_0 = arith.constant 0 : i32
    return %arg0, %c0_i32 : i32, i32
  }
  func.func @transform_1(%arg0: i32) -> (i32, i32) {
    %c0_i32 = arith.constant 0 : i32
    %c0_i32_0 = arith.constant 0 : i32
    %c0_i32_1 = arith.constant 0 : i32
    return %c0_i32, %c0_i32_0 : i32, i32
  }
  func.func @transform_2(%arg0: i32) -> (i32, i32) {
    %c0_i32 = arith.constant 0 : i32
    %c0_i32_0 = arith.constant 0 : i32
    %c0_i32_1 = arith.constant 0 : i32
    return %c0_i32, %c0_i32_0 : i32, i32
  }
  func.func @transform_3(%arg0: i32) -> (i32, i32) {
    %c0_i32 = arith.constant 0 : i32
    %c0_i32_0 = arith.constant 0 : i32
    %c0_i32_1 = arith.constant 0 : i32
    return %c0_i32, %c0_i32_0 : i32, i32
  }
  func.func @transform_4(%arg0: i32) -> (i32, i32) {
    %c0_i32 = arith.constant 0 : i32
    %c0_i32_0 = arith.constant 0 : i32
    return %arg0, %c0_i32 : i32, i32
  }
}

</mosaic_0001>

<llo_original>
// kernel: tpu_custom_call.1
$region0: #{tpu_custom_call.1}
  #allocation0 [shape = 'u32[]', space=smem, size = 0x4, offset = 0x4, fixed_abs, tag = 'smem constant byte address 0x4 - core index']
  #allocation1 [shape = 'u32[144,128]{1,0:T(1,128)}', space=vmem, size = 0x12000, scoped, tag = 'internal scratch']
  %s0 = inlined_call_operand.vmem [shape: f32[32,128], index: 0, kind: input, shape index: {}]
  %s1 = inlined_call_operand.vmem [shape: f32[128,3], index: 1, kind: input, shape index: {}]
  %s2 = inlined_call_operand.vmem [shape: f32[1,3], index: 2, kind: input, shape index: {}]
  %s3 = inlined_call_operand.vmem [shape: f32[1,128], index: 3, kind: input, shape index: {}]
  %s4 = inlined_call_operand.hbm [shape: f32[32,128], index: 4, kind: output, shape index: {}]
  %s5 = sld [smem:[#allocation0]]
  $region49: #{tpu_custom_call.1} parent=0
    _
  %s7 = ssub.s32 1, %s5
  %s8 = scalar_select 0, %s7, %s5
  $region1: #{tpu_custom_call.1} parent=0
    #allocation2 [shape = 'u8[16384]{0}', space=vmem, size = 0x4000, scoped, tag = 'output window, operand 0']
    #allocation3 [shape = 's32[2]{0}', space=sflag, size = 0x8, scoped, tag = 'scoped memory for tpu_custom_call.1']
    %9 = vsyncpa [#allocation3], 0
    %s10 = scalar_lea.sflag [#allocation3], 1
    %11 = vsyncpa %s10, 0
    loop: start=0, step=1, limit=4
    $region2: #{tpu_custom_call.1} parent=1 // loop_pre_header
      _
    $region3: #{tpu_custom_call.1} parent=1 // loop_header
      %s13 = sphi 0, %s17
      %p14 = scmp.ge.s32.totalorder %s13, 4
      %s23 = sphi 0, %s25
      %s26 = sphi 0, %s23
      %s27 = sphi 0, %s26
      %s43 = sphi 0, %s27
      %s47 = sphi 0, %s47
      %s49 = sphi 0, %s47
      %s50 = sphi 0, %s49
      %s64 = sphi 0, %s50
      %s68 = sphi 0, %s68
      %s70 = sphi 0, %s68
      %s71 = sphi 0, %s70
      %s85 = sphi 0, %s71
      %s89 = sphi 0, %s89
      %s91 = sphi 0, %s89
      %s92 = sphi 0, %s91
      %s106 = sphi 0, %s92
      %s112 = sphi 0, %s114
      %s115 = sphi 0, %s112
      %s116 = sphi 0, %s115
      %s132 = sphi 0, %s116
    $region4: #{tpu_custom_call.1} parent=1 // loop_header_branch
      %16 = sbr.rel (%p14) target = $region8
    $region5: #{tpu_custom_call.1} parent=1 // loop_body
      %s18 = ssub.s32 %s13, 1
      %s19 = ssub.s32 %s13, 2
      %s20 = sadd.s32 %s13, 1
      %s21 = ssub.s32 %s13, %s20
      %p22 = scmp.eq.s32.totalorder %s21, 0
      %s24 = sadd.s32 %s23, 1
      %s25 = scalar_select %p22, %s23, %s24
      %p28 = pneg %p22
      %p29 = scmp.eq.s32.totalorder %s13, 1
      %p30 = por %p28, %p29
      %p31 = scmp.ne.s32.totalorder %s23, %s26
      %p32 = scmp.eq.s32.totalorder %s13, 0
      %p33 = por %p31, %p32
      %p34 = scmp.ne.s32.totalorder %s23, %s26
      %p35 = scmp.eq.s32.totalorder %s18, 1
      %p36 = por %p34, %p35
      %p37 = scmp.ne.s32.totalorder %s26, %s27
      %p38 = scmp.eq.s32.totalorder %s18, 0
      %p39 = por %p37, %p38
      %p40 = scmp.ne.s32.totalorder %s26, %s27
      %p41 = scmp.eq.s32.totalorder %s19, 1
      %p42 = por %p40, %p41
      %p44 = scmp.ne.s32.totalorder %s27, %s43
      %p45 = scmp.eq.s32.totalorder %s19, 0
      %p46 = por %p44, %p45
      %s48 = sadd.s32 %s47, 1
      %p51 = scmp.eq.s32.totalorder %s13, 1
      %p52 = scmp.ne.s32.totalorder %s47, %s49
      %p53 = scmp.eq.s32.totalorder %s13, 0
      %p54 = por %p52, %p53
      %p55 = scmp.ne.s32.totalorder %s47, %s49
      %p56 = scmp.eq.s32.totalorder %s18, 1
      %p57 = por %p55, %p56
      %p58 = scmp.ne.s32.totalorder %s49, %s50
      %p59 = scmp.eq.s32.totalorder %s18, 0
      %p60 = por %p58, %p59
      %p61 = scmp.ne.s32.totalorder %s49, %s50
      %p62 = scmp.eq.s32.totalorder %s19, 1
      %p63 = por %p61, %p62
      %p65 = scmp.ne.s32.totalorder %s50, %s64
      %p66 = scmp.eq.s32.totalorder %s19, 0
      %p67 = por %p65, %p66
      %s69 = sadd.s32 %s68, 1
      %p72 = scmp.eq.s32.totalorder %s13, 1
      %p73 = scmp.ne.s32.totalorder %s68, %s70
      %p74 = scmp.eq.s32.totalorder %s13, 0
      %p75 = por %p73, %p74
      %p76 = scmp.ne.s32.totalorder %s68, %s70
      %p77 = scmp.eq.s32.totalorder %s18, 1
      %p78 = por %p76, %p77
      %p79 = scmp.ne.s32.totalorder %s70, %s71
      %p80 = scmp.eq.s32.totalorder %s18, 0
      %p81 = por %p79, %p80
      %p82 = scmp.ne.s32.totalorder %s70, %s71
      %p83 = scmp.eq.s32.totalorder %s19, 1
      %p84 = por %p82, %p83
      %p86 = scmp.ne.s32.totalorder %s71, %s85
      %p87 = scmp.eq.s32.totalorder %s19, 0
      %p88 = por %p86, %p87
      %s90 = sadd.s32 %s89, 1
      %p93 = scmp.eq.s32.totalorder %s13, 1
      %p94 = scmp.ne.s32.totalorder %s89, %s91
      %p95 = scmp.eq.s32.totalorder %s13, 0
      %p96 = por %p94, %p95
      %p97 = scmp.ne.s32.totalorder %s89, %s91
      %p98 = scmp.eq.s32.totalorder %s18, 1
      %p99 = por %p97, %p98
      %p100 = scmp.ne.s32.totalorder %s91, %s92
      %p101 = scmp.eq.s32.totalorder %s18, 0
      %p102 = por %p100, %p101
      %p103 = scmp.ne.s32.totalorder %s91, %s92
      %p104 = scmp.eq.s32.totalorder %s19, 1
      %p105 = por %p103, %p104
      %p107 = scmp.ne.s32.totalorder %s92, %s106
      %p108 = scmp.eq.s32.totalorder %s19, 0
      %p109 = por %p107, %p108
      %s110 = ssub.s32 %s13, %s20
      %p111 = scmp.eq.s32.totalorder %s110, 0
      %s113 = sadd.s32 %s112, 1
      %s114 = scalar_select %p111, %s112, %s113
      %p117 = pneg %p111
      %p118 = scmp.eq.s32.totalorder %s13, 1
      %p119 = por %p117, %p118
      %p120 = scmp.ne.s32.totalorder %s112, %s115
      %p121 = scmp.eq.s32.totalorder %s13, 0
      %p122 = por %p120, %p121
      %p123 = scmp.ne.s32.totalorder %s112, %s115
      %p124 = scmp.eq.s32.totalorder %s18, 1
      %p125 = por %p123, %p124
      %p126 = scmp.ne.s32.totalorder %s115, %s116
      %p127 = scmp.eq.s32.totalorder %s18, 0
      %p128 = por %p126, %p127
      %p129 = scmp.ne.s32.totalorder %s115, %s116
      %p130 = scmp.eq.s32.totalorder %s19, 1
      %p131 = por %p129, %p130
      %p133 = scmp.ne.s32.totalorder %s116, %s132
      %p134 = scmp.eq.s32.totalorder %s19, 0
      %p135 = por %p133, %p134
      %p136 = scmp.le.s32.totalorder 1, %s13
      %p137 = scmp.lt.s32.totalorder %s13, 3
      %p138 = pnand %p136, %p137
      %p139 = pneg %p138
      // Predicated region
      $region9: #{tpu_custom_call.1} parent=5 // pred_check
        _
      $region10: #{tpu_custom_call.1} parent=5 // pred_check_branch
        %141 = sbr.rel (%p138) target = $region12
      $region11: #{tpu_custom_call.1} parent=5 // pred_region
        %s142 = ssub.s32 %s13, 1
        // Predicated region
        $region13: #{tpu_custom_call.1} parent=11 // pred_check
          %p143 = pneg %p60
        $region14: #{tpu_custom_call.1} parent=11 // pred_check_branch
          %145 = sbr.rel (%p143) target = $region16
        $region15: #{tpu_custom_call.1} parent=11 // pred_region
          _
        $region16: #{tpu_custom_call.1} parent=11 // pred_fallthru
          _
        // Predicated region
        $region17: #{tpu_custom_call.1} parent=11 // pred_check
          %p146 = pneg %p81
        $region18: #{tpu_custom_call.1} parent=11 // pred_check_branch
          %148 = sbr.rel (%p146) target = $region20
        $region19: #{tpu_custom_call.1} parent=11 // pred_region
          _
        $region20: #{tpu_custom_call.1} parent=11 // pred_fallthru
          _
        // Predicated region
        $region21: #{tpu_custom_call.1} parent=11 // pred_check
          %p149 = pneg %p102
        $region22: #{tpu_custom_call.1} parent=11 // pred_check_branch
          %151 = sbr.rel (%p149) target = $region24
        $region23: #{tpu_custom_call.1} parent=11 // pred_region
          _
        $region24: #{tpu_custom_call.1} parent=11 // pred_fallthru
          _
      $region12: #{tpu_custom_call.1} parent=5 // pred_fallthru
        _
      %p152 = scmp.lt.s32.totalorder %s13, 2
      // Predicated region
      $region25: #{tpu_custom_call.1} parent=5 // pred_check
        %p153 = pneg %p152
      $region26: #{tpu_custom_call.1} parent=5 // pred_check_branch
        %155 = sbr.rel (%p153) target = $region28
      $region27: #{tpu_custom_call.1} parent=5 // pred_region
        // Predicated region
        $region29: #{tpu_custom_call.1} parent=27 // pred_check
          %p156 = pneg %p33
        $region30: #{tpu_custom_call.1} parent=27 // pred_check_branch
          %158 = sbr.rel (%p156) target = $region32
        $region31: #{tpu_custom_call.1} parent=27 // pred_region
          %s159 = smul.u32 2, %s13
          %p160 = scmp.lt.s32.totalorder %s159, 3
          %s161 = scalar_select %p160, %s159, 3
          %s162 = smul.addr %s161, 8
          %s163 = scalar_lea.vmem %s0, %s162
          %s164 = smul.u32 2, %s13
        $region32: #{tpu_custom_call.1} parent=27 // pred_fallthru
          _
      $region28: #{tpu_custom_call.1} parent=5 // pred_fallthru
        _
      %p165 = scmp.le.s32.totalorder 1, %s13
      %p166 = scmp.lt.s32.totalorder %s13, 3
      %p167 = pnand %p165, %p166
      %p168 = pneg %p167
      // Predicated region
      $region33: #{tpu_custom_call.1} parent=5 // pred_check
        _
      $region34: #{tpu_custom_call.1} parent=5 // pred_check_branch
        %170 = sbr.rel (%p167) target = $region36
      $region35: #{tpu_custom_call.1} parent=5 // pred_region
        %s171 = ssub.s32 %s13, 1
        %s172 = smul.u32 2, %s18
        %p173 = scmp.lt.s32.totalorder %s172, 3
        %s174 = scalar_select %p173, %s172, 3
        %s175 = smul.addr %s174, 8
        %s176 = scalar_lea.vmem %s0, %s175
        %p177 = pneg %p39
        %p178 = pneg %p36
        %p179 = pneg %p60
        %p180 = pneg %p57
        %p181 = pneg %p81
        %p182 = pneg %p78
        %p183 = pneg %p102
        %p184 = pneg %p99
        %p185 = pneg %p128
        %p186 = pneg %p125
        %s187 = sand.u32 %s115, 1
        %s188 = scalar_lea.sflag [#allocation3], %s187
        %s189 = sand.u32 %s115, 1
        %s190 = smul.addr %s189, 16
        %s191 = scalar_lea.vmem [#allocation2], %s190
        %s192 = smul.u32 2, %s18
        %p193 = scmp.lt.s32.totalorder %s192, 3
        %s194 = scalar_select %p193, %s192, 3
        %s195 = smul.addr %s194, 8
        %s196 = scalar_lea.vmem %s0, %s195
        %s197 = smul.u32 2, %s18
        %s198 = smul.u32 2, %s18
        %v199 = vld [vmem:[%s196] sm:$0xff]
        %v200 = vld [vmem:[%s196 + $0x8] sm:$0xff]
        %v201 = vld [vmem:[%s1] sm:$0xff]
        %v202 = vld [vmem:[%s1 + $0x8] sm:$0xff]
        %v203 = vld [vmem:[%s1 + $0x10] sm:$0xff]
        %v204 = vld [vmem:[%s1 + $0x18] sm:$0xff]
        %v205 = vld [vmem:[%s1 + $0x20] sm:$0xff]
        %v206 = vld [vmem:[%s1 + $0x28] sm:$0xff]
        %v207 = vld [vmem:[%s1 + $0x30] sm:$0xff]
        %v208 = vld [vmem:[%s1 + $0x38] sm:$0xff]
        %v209 = vld [vmem:[%s1 + $0x40] sm:$0xff]
        %v210 = vld [vmem:[%s1 + $0x48] sm:$0xff]
        %v211 = vld [vmem:[%s1 + $0x50] sm:$0xff]
        %v212 = vld [vmem:[%s1 + $0x58] sm:$0xff]
        %v213 = vld [vmem:[%s1 + $0x60] sm:$0xff]
        %v214 = vld [vmem:[%s1 + $0x68] sm:$0xff]
        %v215 = vld [vmem:[%s1 + $0x70] sm:$0xff]
        %v216 = vld [vmem:[%s1 + $0x78] sm:$0xff]
        %217 = vmatprep.subr.mxu0 0.0
        %218 = vmatpush1.msra.mxu0 %v201
        %219 = vmatprep.subr.mxu0 0.0
        %220 = vmatpush1.msra.mxu0 %v202
        %221 = vmatprep.subr.mxu0 0.0
        %222 = vmatpush1.msra.mxu0 %v203
        %223 = vmatprep.subr.mxu0 0.0
        %224 = vmatpush1.msra.mxu0 %v204
        %225 = vmatprep.subr.mxu0 0.0
        %226 = vmatpush1.msra.mxu0 %v205
        %227 = vmatprep.subr.mxu0 0.0
        %228 = vmatpush1.msra.mxu0 %v206
        %229 = vmatprep.subr.mxu0 0.0
        %230 = vmatpush1.msra.mxu0 %v207
        %231 = vmatprep.subr.mxu0 0.0
        %232 = vmatpush1.msra.mxu0 %v208
        %233 = vmatprep.subr.mxu0 0.0
        %234 = vmatpush1.msra.mxu0 %v209
        %235 = vmatprep.subr.mxu0 0.0
        %236 = vmatpush1.msra.mxu0 %v210
        %237 = vmatprep.subr.mxu0 0.0
        %238 = vmatpush1.msra.mxu0 %v211
        %239 = vmatprep.subr.mxu0 0.0
        %240 = vmatpush1.msra.mxu0 %v212
        %241 = vmatprep.subr.mxu0 0.0
        %242 = vmatpush1.msra.mxu0 %v213
        %243 = vmatprep.subr.mxu0 0.0
        %244 = vmatpush1.msra.mxu0 %v214
        %245 = vmatprep.subr.mxu0 0.0
        %246 = vmatpush1.msra.mxu0 %v215
        %247 = vmatprep.subr.mxu0 0.0
        %248 = vmatpush1.msra.mxu0 %v216
        %249 = vmatprep.subr.mxu0 0.0
        %250 = vmatpush1.msra.mxu0 0.0
        %251 = vmatprep.subr.mxu0 0.0
        %252 = vmatpush1.msra.mxu0 0.0
        %253 = vmatprep.subr.mxu0 0.0
        %254 = vmatpush1.msra.mxu0 0.0
        %255 = vmatprep.subr.mxu0 0.0
        %256 = vmatpush1.msra.mxu0 0.0
        %257 = vmatprep.subr.mxu0 0.0
        %258 = vmatpush1.msra.mxu0 0.0
        %259 = vmatprep.subr.mxu0 0.0
        %260 = vmatpush1.msra.mxu0 0.0
        %261 = vmatprep.subr.mxu0 0.0
        %262 = vmatpush1.msra.mxu0 0.0
        %263 = vmatprep.subr.mxu0 0.0
        %264 = vmatpush1.msra.mxu0 0.0
        %265 = vmatprep.subr.mxu0 0.0
        %266 = vmatpush1.msra.mxu0 0.0
        %267 = vmatprep.subr.mxu0 0.0
        %268 = vmatpush1.msra.mxu0 0.0
        %269 = vmatprep.subr.mxu0 0.0
        %270 = vmatpush1.msra.mxu0 0.0
        %271 = vmatprep.subr.mxu0 0.0
        %272 = vmatpush1.msra.mxu0 0.0
        %273 = vmatprep.subr.mxu0 0.0
        %274 = vmatpush1.msra.mxu0 0.0
        %275 = vmatprep.subr.mxu0 0.0
        %276 = vmatpush1.msra.mxu0 0.0
        %277 = vmatprep.subr.mxu0 0.0
        %278 = vmatpush1.msra.mxu0 0.0
        %279 = vmatprep.subr.mxu0 0.0
        %280 = vmatpush1.msra.mxu0 0.0
        %281 = vmatprep.mubr.f32.mxu0 0.0
        %282 = vmatmul.mubr.f32.gmra.mrb[0].mxu0 %v199
        %v283 = vpop.f32.mrb[0].mxu0
        %v284 = vadd.f32 0.0, %v283
        %v285 = vpop.f32.mrb[0].mxu0
        %286 = vmatprep.mubr.f32.mxu0 0.0
        %287 = vmatmul.mubr.f32.gmra.mrb[0].mxu0 %v200
        %v288 = vpop.f32.mrb[0].mxu0
        %v289 = vadd.f32 0.0, %v288
        %v290 = vpop.f32.mrb[0].mxu0
        %291 = vdwg.mxu0
        %v292 = vld [vmem:[%s2] sm:$0x1]
        %v294 = vlaneseq
        %v295 = vshrl.u32 %v294, 7
        %v296 = vsub.s32 0, %v295
        %v297 = vrot.slane %v292, %v296
        %v299 = vadd.f32 %v284, %v297
        %v300 = vadd.f32 %v289, %v297
        %v301 = vadd.f32 %v299, 1.0
        %v302 = vadd.f32 %v300, 1.0
        %305 = vrot.lane.b32.xlu0 %v284, 127
        %v306 = vpop.permute.xlu0 %305
        %307 = vrot.lane.b32.xlu0 %v289, 127
        %v308 = vpop.permute.xlu0 %307
        %v311 = vmul.f32 %v301, %v306
        %v312 = vmul.f32 %v302, %v308
        %313 = vrot.lane.b32.xlu0 %v297, 127
        %v314 = vpop.permute.xlu0 %313
        %v316 = vadd.f32 %v311, %v314
        %v317 = vadd.f32 %v312, %v314
        %v318 = vadd.f32 %v301, %v316
        %v319 = vadd.f32 %v302, %v317
        %320 = vrot.lane.b32.xlu0 %v284, 126
        %v321 = vpop.permute.xlu0 %320
        %322 = vrot.lane.b32.xlu0 %v289, 126
        %v323 = vpop.permute.xlu0 %322
        %v326 = vmul.f32 %v318, %v321
        %v327 = vmul.f32 %v319, %v323
        %328 = vrot.lane.b32.xlu0 %v297, 126
        %v329 = vpop.permute.xlu0 %328
        %v331 = vadd.f32 %v326, %v329
        %v332 = vadd.f32 %v327, %v329
        %v333 = vadd.f32 %v318, %v331
        %v334 = vadd.f32 %v319, %v332
        %336 = vset.pattern.permute.xlu0 0
        %337 = vperm.xlu0 %336, %v333
        %v338 = vpop.permute.xlu0 %337
        %341 = vset.pattern.permute.xlu0 0
        %342 = vperm.xlu0 %341, %v334
        %v343 = vpop.permute.xlu0 %342
        %v345 = vmul.f32 %v199, %v338
        %v346 = vmul.f32 %v200, %v343
        %v347 = vld [vmem:[%s3] sm:$0x1]
        %v349 = vlaneseq
        %v350 = vshrl.u32 %v349, 7
        %v351 = vsub.s32 0, %v350
        %v352 = vrot.slane %v347, %v351
        %v354 = vadd.f32 %v345, %v352
        %v355 = vadd.f32 %v346, %v352
        %356 = vst [vmem:[%s191] sm:$0xff] %v354
        %357 = vst [vmem:[%s191 + $0x8] sm:$0xff] %v355
        %s358 = sand.u32 %s115, 1
        %s359 = scalar_lea.sflag [#allocation3], %s358
        %s360 = sand.u32 %s115, 1
        %s361 = smul.addr %s360, 16
        %s362 = scalar_lea.vmem [#allocation2], %s361
        // Predicated region
        $region37: #{tpu_custom_call.1} parent=35 // pred_check
          %p363 = pneg %p125
        $region38: #{tpu_custom_call.1} parent=35 // pred_check_branch
          %365 = sbr.rel (%p363) target = $region40
        $region39: #{tpu_custom_call.1} parent=35 // pred_region
          %s366 = smul.u32 2, %s18
          %s368 = ssub.s32 256, 256
          %369 = vsyncadd %s359, %s368
          %s370 = smul.addr %s366, 128
          %s371 = scalar_lea.hbm %s4, %s370
          %s372 = sshll.u32 %s362, 4
          %s373 = int_to_ptr.vmem [resolvable:$true] %s372
          %378 = dma.vmem_to_hbm [thread:$0]  %s373, 256, %s371, %s359, 128, 128, 8
        $region40: #{tpu_custom_call.1} parent=35 // pred_fallthru
          _
      $region36: #{tpu_custom_call.1} parent=5 // pred_fallthru
        _
      %p379 = scmp.le.s32.totalorder 2, %s13
      // Predicated region
      $region41: #{tpu_custom_call.1} parent=5 // pred_check
        %p380 = pneg %p379
      $region42: #{tpu_custom_call.1} parent=5 // pred_check_branch
        %382 = sbr.rel (%p380) target = $region44
      $region43: #{tpu_custom_call.1} parent=5 // pred_region
        %s383 = ssub.s32 %s13, 2
        // Predicated region
        $region45: #{tpu_custom_call.1} parent=43 // pred_check
          %p384 = pneg %p131
        $region46: #{tpu_custom_call.1} parent=43 // pred_check_branch
          %386 = sbr.rel (%p384) target = $region48
        $region47: #{tpu_custom_call.1} parent=43 // pred_region
          %s387 = sand.u32 %s116, 1
          %s388 = scalar_lea.sflag [#allocation3], %s387
          %s389 = sand.u32 %s116, 1
          %s390 = smul.addr %s389, 16
          %s391 = scalar_lea.vmem [#allocation2], %s390
          %392 = dma.done %s388, 256
        $region48: #{tpu_custom_call.1} parent=43 // pred_fallthru
          _
      $region44: #{tpu_custom_call.1} parent=5 // pred_fallthru
        _
    $region6: #{tpu_custom_call.1} parent=1 // loop_footer
      %s17 = sadd.s32 1, %s13
    $region7: #{tpu_custom_call.1} parent=1 // loop_footer_branch
      %12 = sbr.rel target = $region3
    $region8: #{tpu_custom_call.1} parent=1 // loop_exit
      _
    %393 = vsyncpa [#allocation3], 1
    %s394 = scalar_lea.sflag [#allocation3], 1
    %395 = vsyncpa %s394, 1

</llo_original>
